<compile_context>
chip_gen: v7x
topology: tpu7x:2x2x1
jax: 0.10.0
libtpu: 0.0.40
codegen_flags: <defaults>
</compile_context>

<pallas_src>
import functools

import jax
import jax.numpy as jnp
from jax import lax
from jax.experimental import pallas as pl
from jax.experimental.pallas import tpu as pltpu


def _round_up(n, m):
    return ((n + m - 1) // m) * m


def _pick_tile(n_pad, target):
    """Largest multiple of 128 that divides n_pad and is <= max(128, target)."""
    t = min(max(target, 128), n_pad)
    t -= t % 128
    while n_pad % t:
        t -= 128
    return t


def _default_exp_dtype(compute_dtype):
    """bf16 exp only on chips with a bf16 EUP (v6e/v7x); f32 elsewhere (v5e)."""
    if jnp.dtype(compute_dtype) == jnp.dtype(jnp.float32):
        return jnp.float32
    try:
        kind = jax.devices()[0].device_kind.lower()
    except Exception:
        return jnp.float32
    if ("v6" in kind) or ("v7" in kind) or ("7x" in kind):
        return compute_dtype
    return jnp.float32


# ----------------------------------------------------------------------------
# Kernels
# ----------------------------------------------------------------------------

def _flash_kernel(qT_ref, k_ref, v_ref, x_ref, wd_ref, bd_ref, o_ref,
                  m_scr, acc_scr, *, latent, cdt, exp_dtype):
    """Multi-tile online softmax over the query axis (PyTorch softmax(dim=1)).

    Grid = (batch b, output/key tile j, query/value tile i).  NOTE: axis 2 (i)
    MUST remain the innermost ("arbitrary") axis: the running-softmax scratch is
    reset at i == 0 and consumed at i == ni - 1 for every (b, j) pair.
    """
    i = pl.program_id(2)
    ni = pl.num_programs(2)

    @pl.when(i == 0)
    def _init():
        m_scr[...] = jnp.full_like(m_scr, -jnp.inf)
        acc_scr[...] = jnp.zeros_like(acc_scr)

    # score[ii, jj] = q[ii, :] . k[:, jj]; Q is streamed pre-transposed so this is a
    # plain (TI, L) @ (L, TJ) MXU matmul — no per-step XLU transpose.
    s_blk = jnp.dot(qT_ref[...], k_ref[...],
                    preferred_element_type=jnp.float32)                   # (TI,TJ) f32

    m_prev = m_scr[...]                                                   # (1, TJ)
    m_new = jnp.maximum(m_prev, jnp.max(s_blk, axis=0, keepdims=True))
    alpha = jnp.exp(m_prev - m_new)                                       # (1, TJ) f32
    e_blk = jnp.exp((s_blk - m_new).astype(exp_dtype)).astype(cdt)        # (TI,TJ)

    # Ones-row fold: v_ref is (L+1, TI) with row L all-ones (zero at padded query
    # positions), so pv[L] is the softmax denominator — no VPU/XLU column sum.
    pv = jnp.dot(v_ref[...], e_blk, preferred_element_type=jnp.float32)   # (L+1,TJ)
    acc_scr[...] = alpha * acc_scr[...] + pv
    m_scr[...] = m_new

    @pl.when(i == ni - 1)
    def _finalize():
        acc = acc_scr[...]
        # Exact normalization — runs once per output tile, reciprocal cost is nil.
        attn_v = (acc[:latent] / acc[latent:]).astype(cdt)                # (L, TJ)
        dec = jnp.dot(wd_ref[...], attn_v,
                      preferred_element_type=jnp.float32) + bd_ref[...]   # (C, TJ)
        o_ref[...] = (dec + x_ref[...].astype(jnp.float32)).astype(o_ref.dtype)


def _single_pass_kernel(qT_ref, k_ref, v_ref, x_ref, wd_ref, bd_ref, o_ref,
                        *, latent, cdt, exp_dtype):
    """Fast path when all (padded) queries fit in one tile: plain in-tile softmax."""
    s = jnp.dot(qT_ref[...], k_ref[...], preferred_element_type=jnp.float32)
    m = jnp.max(s, axis=0, keepdims=True)
    e = jnp.exp((s - m).astype(exp_dtype)).astype(cdt)
    pv = jnp.dot(v_ref[...], e, preferred_element_type=jnp.float32)       # (L+1,TJ)
    attn_v = (pv[:latent] / pv[latent:]).astype(cdt)
    dec = jnp.dot(wd_ref[...], attn_v,
                  preferred_element_type=jnp.float32) + bd_ref[...]
    o_ref[...] = (dec + x_ref[...].astype(jnp.float32)).astype(o_ref.dtype)


# ----------------------------------------------------------------------------
# Wrapper
# ----------------------------------------------------------------------------

def init_params(key, num_features, reduce_ratio=2):
    latent = num_features // reduce_ratio
    k1, k2, k3, k4 = jax.random.split(key, 4)
    return dict(
        wt=jax.random.normal(k1, (3 * latent, num_features), jnp.float32) * 0.1,
        bt=jax.random.normal(k2, (3 * latent,), jnp.float32) * 0.1,
        wd=jax.random.normal(k3, (num_features, latent), jnp.float32) * 0.1,
        bd=jax.random.normal(k4, (num_features,), jnp.float32) * 0.1,
    )


def nonlocal_block(x_nchw, params, *, reduce_ratio=2, block_size=1,
                   tile_j=512, tile_i=512, compute_dtype=jnp.bfloat16,
                   softmax_exp_dtype=None,
                   vmem_limit_bytes=64 * 1024 * 1024):
    # TODO(synk): AvgPool2d downsample of Q/V for block_size > 1 not implemented
    # (module default block_size=1).
    assert block_size == 1
    B, C, H, W = x_nchw.shape
    N = H * W
    L = C // reduce_ratio
    cdt = compute_dtype
    exp_dtype = (_default_exp_dtype(cdt) if softmax_exp_dtype is None
                 else softmax_exp_dtype)

    # ---- one-shot pre-projection (hoisted out of the flash loop) ------------
    x3 = x_nchw.reshape(B, C, N)
    wt = params["wt"].astype(jnp.float32)                       # (3L, C)
    bt = params["bt"].astype(jnp.float32)                       # (3L,)
    # PyTorch channel split: Q=[0,L), V=[L,2L), K=[2L,3L).  Fold 1/sqrt(L) into
    # the Q weights/bias so the kernel never rescales scores.
    inv_rdk = 1.0 / (L ** 0.5)
    scale = jnp.concatenate([jnp.full((L,), inv_rdk, jnp.float32),
                             jnp.ones((2 * L,), jnp.float32)])
    w_all = wt * scale[:, None]
    b_all = (bt * scale)[None, :, None]
    if jnp.dtype(cdt) == jnp.dtype(jnp.float32):
        t = jnp.einsum('oc,bcn->bon', w_all, x3,
                       precision=lax.Precision.HIGHEST) + b_all            # (B,3L,N)
    else:
        t = jnp.einsum('oc,bcn->bon', w_all.astype(cdt), x3.astype(cdt),
                       preferred_element_type=jnp.float32) + b_all
    qT = jnp.swapaxes(t[:, :L], 1, 2).astype(cdt)                # (B, N, L)
    v_aug = jnp.concatenate(
        [t[:, L:2 * L], jnp.ones((B, 1, N), jnp.float32)], axis=1).astype(cdt)
    k = t[:, 2 * L:].astype(cdt)                                 # (B, L, N)

    # ---- pad N to a lane-dense multiple of 128 (zero tails => no masking) ---
    N_pad = _round_up(N, 128)
    if N_pad != N:
        pad = N_pad - N
        qT = jnp.pad(qT, ((0, 0), (0, pad), (0, 0)))      # padded queries: zero rows
        v_aug = jnp.pad(v_aug, ((0, 0), (0, 0), (0, pad)))  # padded values + ones row: 0
        k = jnp.pad(k, ((0, 0), (0, 0), (0, pad)))        # padded key cols -> discarded
        x_res = jnp.pad(x3, ((0, 0), (0, 0), (0, pad)))
    else:
        x_res = x3

    wd = params["wd"].astype(cdt)                                # (C, L)
    bd = params["bd"].astype(jnp.float32).reshape(C, 1)          # (C, 1)

    # ---- tiling --------------------------------------------------------------
    tj = _pick_tile(N_pad, tile_j)
    # Megacore (v7x): make sure there are >= 2 parallel (b, j) slices.
    if B * (N_pad // tj) < 2 and N_pad >= 256:
        tj = _pick_tile(N_pad, N_pad // 2)
    ti = _pick_tile(N_pad, tile_i)
    n_j, n_i = N_pad // tj, N_pad // ti
    grid = (B, n_j, n_i)
    single_pass = (n_i == 1)

    sq = pl.Squeezed()
    in_specs = [
        pl.BlockSpec((sq, ti, L), lambda bb, j, i: (bb, i, 0)),        # Q^T tile i
        pl.BlockSpec((sq, L, tj), lambda bb, j, i: (bb, 0, j)),        # K tile j
        pl.BlockSpec((sq, L + 1, ti), lambda bb, j, i: (bb, 0, i)),    # [V; 1] tile i
        pl.BlockSpec((sq, C, tj), lambda bb, j, i: (bb, 0, j)),        # x residual tile j
        pl.BlockSpec((C, L), lambda bb, j, i: (0, 0)),                 # wd
        pl.BlockSpec((C, 1), lambda bb, j, i: (0, 0)),                 # bd
    ]
    out_spec = pl.BlockSpec((sq, C, tj), lambda bb, j, i: (bb, 0, j))

    if single_pass:
        kernel = functools.partial(_single_pass_kernel, latent=L, cdt=cdt,
                                   exp_dtype=exp_dtype)
        scratch = []
    else:
        kernel = functools.partial(_flash_kernel, latent=L, cdt=cdt,
                                   exp_dtype=exp_dtype)
        scratch = [pltpu.VMEM((1, tj), jnp.float32),        # running max  m
                   pltpu.VMEM((L + 1, tj), jnp.float32)]    # running [acc; sum]

    elt = jnp.dtype(cdt).itemsize
    cost = pl.CostEstimate(
        flops=int(2 * B * N_pad * N_pad * (2 * L + 1) + 2 * B * C * L * N_pad),
        transcendentals=int(B * N_pad * N_pad),
        bytes_accessed=int(B * N_pad * n_j * (2 * L + 1) * elt      # Q^T + [V;1] streams
                           + B * L * N_pad * elt                    # K
                           + 2 * B * C * N_pad * x_nchw.dtype.itemsize))  # x + out

    out = pl.pallas_call(
        kernel,
        out_shape=jax.ShapeDtypeStruct((B, C, N_pad), x_nchw.dtype),
        grid_spec=pltpu.PrefetchScalarGridSpec(
            num_scalar_prefetch=0,
            grid=grid,
            in_specs=in_specs,
            out_specs=out_spec,
            scratch_shapes=scratch,
        ),
        compiler_params=pltpu.CompilerParams(
            dimension_semantics=("parallel", "parallel", "arbitrary"),
            vmem_limit_bytes=vmem_limit_bytes),
        cost_estimate=cost,
    )(qT, k, v_aug, x_res, wd, bd)

    if N_pad != N:
        out = out[:, :, :N]
    return out.reshape(B, C, H, W)


# ----------------------------------------------------------------------------
# Pure-JAX reference (matches the PyTorch forward exactly, NCHW)
# ----------------------------------------------------------------------------

def reference(x, params, *, reduce_ratio=2):
    B, C, H, W = x.shape
    L = C // reduce_ratio
    rdk = L ** 0.5
    hp = lax.Precision.HIGHEST
    t = jnp.einsum('oc,bchw->bohw', params["wt"], x, precision=hp) \
        + params["bt"][None, :, None, None]
    q, v, k = t[:, :L], t[:, L:2 * L], t[:, 2 * L:]
    qf = q.reshape(B, L, -1)
    kf = k.reshape(B, L, -1)
    vf = v.reshape(B, L, -1)
    score = jnp.einsum('bci,bcj->bij', qf, kf, precision=hp) / rdk
    attn = jax.nn.softmax(score, axis=1)
    out = jnp.einsum('bci,bij->bcj', vf, attn, precision=hp).reshape(B, L, H, W)
    out = jnp.einsum('oc,bchw->bohw', params["wd"], out, precision=hp) \
        + params["bd"][None, :, None, None]
    return out + x


if __name__ == "__main__":
    key = jax.random.PRNGKey(0)
    kx, kp, kx2 = jax.random.split(key, 3)

    B, C, H, W = 2, 4, 16, 16          # num_features=4, reduce_ratio=2 -> latent=2
    x = jax.random.normal(kx, (B, C, H, W), jnp.float32)
    params = init_params(kp, C, reduce_ratio=2)
    ref = reference(x, params, reduce_ratio=2)

    # 1) f32, multi-tile flash path (grid = (2, 2, 2)): tight check of the online
    #    softmax, ones-row denominator fold and exact normalization.
    out_f32 = nonlocal_block(x, params, tile_j=128, tile_i=128,
                             compute_dtype=jnp.float32)
    out_f32 = jax.block_until_ready(out_f32)
    assert out_f32.shape == ref.shape == (B, C, H, W)
    err32 = float(jnp.max(jnp.abs(out_f32 - ref)))
    assert jnp.allclose(out_f32, ref, atol=2e-3, rtol=2e-3), f"f32 max_err={err32}"

    # 2) f32, non-128-multiple N (H=W=12 -> N=144 padded to 256): exercises the
    #    zero-padded lane-dense layout + multi-tile reduction with padded tails.
    x2 = jax.random.normal(kx2, (B, C, 12, 12), jnp.float32)
    ref2 = reference(x2, params, reduce_ratio=2)
    out_pad = nonlocal_block(x2, params, tile_j=128, tile_i=128,
                             compute_dtype=jnp.float32)
    out_pad = jax.block_until_ready(out_pad)
    errp = float(jnp.max(jnp.abs(out_pad - ref2)))
    assert out_pad.shape == ref2.shape
    assert jnp.allclose(out_pad, ref2, atol=2e-3, rtol=2e-3), f"pad max_err={errp}"

    # 3) bf16 MXU path with default tiles (N <= tile_i): scratch-free single-pass
    #    kernel; looser tolerance reflecting bf16 operand rounding.
    out_bf16 = nonlocal_block(x, params)   # defaults: bf16, tile 512 -> single pass
    out_bf16 = jax.block_until_ready(out_bf16)
    errbf = float(jnp.max(jnp.abs(out_bf16 - ref)))
    assert jnp.allclose(out_bf16, ref, atol=5e-2, rtol=5e-2), f"bf16 max_err={errbf}"

    print("KERNEL_OK")
</pallas_src>

<mosaic_0001>
module attributes {stable_mosaic.version = 11 : i64} {
  func.func @_flash_kernel(%arg0: i32, %arg1: i32, %arg2: i32, %arg3: memref<1x128x2xf32, #tpu.memory_space<vmem>>, %arg4: memref<1x2x128xf32, #tpu.memory_space<vmem>>, %arg5: memref<1x3x128xf32, #tpu.memory_space<vmem>>, %arg6: memref<1x4x128xf32, #tpu.memory_space<vmem>>, %arg7: memref<4x2xf32, #tpu.memory_space<vmem>>, %arg8: memref<4x1xf32, #tpu.memory_space<vmem>>, %arg9: memref<1x4x128xf32, #tpu.memory_space<vmem>>, %arg10: memref<1x128xf32, #tpu.memory_space<vmem>>, %arg11: memref<3x128xf32, #tpu.memory_space<vmem>>) attributes {dimension_semantics = [#tpu.dimension_semantics<parallel>, #tpu.dimension_semantics<parallel>, #tpu.dimension_semantics<arbitrary>], iteration_bounds = array<i64: 2, 2, 2>, scalar_prefetch = 0 : i64, scratch_operands = 2 : i64, tpu.core_type = #tpu.core_type<tc>, window_params = [{transform_indices = @transform_0, window_bounds = array<i64: 1, 128, 2>}, {transform_indices = @transform_1, window_bounds = array<i64: 1, 2, 128>}, {transform_indices = @transform_2, window_bounds = array<i64: 1, 3, 128>}, {transform_indices = @transform_3, window_bounds = array<i64: 1, 4, 128>}, {pipeline_mode = #tpu.pipeline_mode<synchronous>, transform_indices = @transform_4, window_bounds = array<i64: 4, 2>}, {pipeline_mode = #tpu.pipeline_mode<synchronous>, transform_indices = @transform_5, window_bounds = array<i64: 4, 1>}, {transform_indices = @transform_6, window_bounds = array<i64: 1, 4, 128>}]} {
    %c0_i32 = arith.constant 0 : i32
    %0 = arith.cmpi eq, %arg2, %c0_i32 : i32
    %1 = arith.extui %0 : i1 to i32
    %c0_i32_0 = arith.constant 0 : i32
    %2 = arith.cmpi ne, %1, %c0_i32_0 : i32
    scf.if %2 {
      %cst_20 = arith.constant 0xFF800000 : f32
      %29 = vector.broadcast %cst_20 : f32 to vector<1x128xf32>
      %c0_21 = arith.constant 0 : index
      %c0_22 = arith.constant 0 : index
      %30 = vector.load %arg10[%c0_21, %c0_22] : memref<1x128xf32, #tpu.memory_space<vmem>>, vector<1x128xf32>
      tpu.vector_store %arg10[%c0_21, %c0_22], %29 {strides = array<i32>} : memref<1x128xf32, #tpu.memory_space<vmem>>, vector<1x128xf32>,
      %cst_23 = arith.constant 0.000000e+00 : f32
      %31 = vector.broadcast %cst_23 : f32 to vector<3x128xf32>
      %c0_24 = arith.constant 0 : index
      %c0_25 = arith.constant 0 : index
      %32 = vector.load %arg11[%c0_24, %c0_25] : memref<3x128xf32, #tpu.memory_space<vmem>>, vector<3x128xf32>
      tpu.vector_store %arg11[%c0_24, %c0_25], %31 {strides = array<i32>} : memref<3x128xf32, #tpu.memory_space<vmem>>, vector<3x128xf32>,
    } else {
    }
    %c0 = arith.constant 0 : index
    %c0_1 = arith.constant 0 : index
    %c0_2 = arith.constant 0 : index
    %3 = vector.load %arg3[%c0, %c0_1, %c0_2] : memref<1x128x2xf32, #tpu.memory_space<vmem>>, vector<1x128x2xf32>
    %4 = vector.shape_cast %3 : vector<1x128x2xf32> to vector<128x2xf32>
    %c0_3 = arith.constant 0 : index
    %c0_4 = arith.constant 0 : index
    %c0_5 = arith.constant 0 : index
    %5 = vector.load %arg4[%c0_3, %c0_4, %c0_5] : memref<1x2x128xf32, #tpu.memory_space<vmem>>, vector<1x2x128xf32>
    %6 = vector.shape_cast %5 : vector<1x2x128xf32> to vector<2x128xf32>
    %cst = arith.constant dense<0.000000e+00> : vector<128x128xf32>
    %7 = tpu.matmul %4, %6, %cst {dimension_numbers = #tpu.dot_dimension_numbers<[1], [0], [0], [1], [0, 0, 1, 1], [], []>} : vector<128x2xf32>, vector<2x128xf32>, vector<128x128xf32> -> vector<128x128xf32>
    %c0_6 = arith.constant 0 : index
    %c0_7 = arith.constant 0 : index
    %8 = vector.load %arg10[%c0_6, %c0_7] : memref<1x128xf32, #tpu.memory_space<vmem>>, vector<1x128xf32>
    %cst_8 = arith.constant dense<0xFF800000> : vector<128xf32>
    %9 = vector.multi_reduction <maximumf>, %7, %cst_8 [0] : vector<128x128xf32> to vector<128xf32>
    %10 = vector.shape_cast %9 : vector<128xf32> to vector<1x128xf32>
    %11 = arith.maximumf %8, %10 : vector<1x128xf32>
    %12 = arith.subf %8, %11 : vector<1x128xf32>
    %13 = math.exp %12 : vector<1x128xf32>
    %14 = vector.broadcast %11 : vector<1x128xf32> to vector<128x128xf32>
    %15 = arith.subf %7, %14 : vector<128x128xf32>
    %16 = math.exp %15 : vector<128x128xf32>
    %c0_9 = arith.constant 0 : index
    %c0_10 = arith.constant 0 : index
    %c0_11 = arith.constant 0 : index
    %17 = vector.load %arg5[%c0_9, %c0_10, %c0_11] : memref<1x3x128xf32, #tpu.memory_space<vmem>>, vector<1x3x128xf32>
    %18 = vector.shape_cast %17 : vector<1x3x128xf32> to vector<3x128xf32>
    %cst_12 = arith.constant dense<0.000000e+00> : vector<3x128xf32>
    %19 = tpu.matmul %18, %16, %cst_12 {dimension_numbers = #tpu.dot_dimension_numbers<[1], [0], [0], [1], [0, 0, 1, 1], [], []>} : vector<3x128xf32>, vector<128x128xf32>, vector<3x128xf32> -> vector<3x128xf32>
    %c0_13 = arith.constant 0 : index
    %c0_14 = arith.constant 0 : index
    %20 = vector.load %arg11[%c0_13, %c0_14] : memref<3x128xf32, #tpu.memory_space<vmem>>, vector<3x128xf32>
    %21 = vector.broadcast %13 : vector<1x128xf32> to vector<3x128xf32>
    %22 = arith.mulf %21, %20 : vector<3x128xf32>
    %23 = arith.addf %22, %19 : vector<3x128xf32>
    %c0_15 = arith.constant 0 : index
    %c0_16 = arith.constant 0 : index
    %24 = vector.load %arg11[%c0_15, %c0_16] : memref<3x128xf32, #tpu.memory_space<vmem>>, vector<3x128xf32>
    tpu.vector_store %arg11[%c0_15, %c0_16], %23 {strides = array<i32>} : memref<3x128xf32, #tpu.memory_space<vmem>>, vector<3x128xf32>,
    %c0_17 = arith.constant 0 : index
    %c0_18 = arith.constant 0 : index
    %25 = vector.load %arg10[%c0_17, %c0_18] : memref<1x128xf32, #tpu.memory_space<vmem>>, vector<1x128xf32>
    tpu.vector_store %arg10[%c0_17, %c0_18], %11 {strides = array<i32>} : memref<1x128xf32, #tpu.memory_space<vmem>>, vector<1x128xf32>,
    %c1_i32 = arith.constant 1 : i32
    %26 = arith.cmpi eq, %arg2, %c1_i32 : i32
    %27 = arith.extui %26 : i1 to i32
    %c0_i32_19 = arith.constant 0 : i32
    %28 = arith.cmpi ne, %27, %c0_i32_19 : i32
    scf.if %28 {
      %c0_20 = arith.constant 0 : index
      %c0_21 = arith.constant 0 : index
      %29 = vector.load %arg11[%c0_20, %c0_21] : memref<3x128xf32, #tpu.memory_space<vmem>>, vector<3x128xf32>
      %30 = vector.extract_strided_slice %29 {offsets = [0, 0], sizes = [2, 128], strides = [1, 1]} : vector<3x128xf32> to vector<2x128xf32>
      %31 = vector.extract_strided_slice %29 {offsets = [2, 0], sizes = [1, 128], strides = [1, 1]} : vector<3x128xf32> to vector<1x128xf32>
      %32 = vector.broadcast %31 : vector<1x128xf32> to vector<2x128xf32>
      %33 = arith.divf %30, %32 : vector<2x128xf32>
      %c0_22 = arith.constant 0 : index
      %c0_23 = arith.constant 0 : index
      %34 = vector.load %arg7[%c0_22, %c0_23] : memref<4x2xf32, #tpu.memory_space<vmem>>, vector<4x2xf32>
      %cst_24 = arith.constant dense<0.000000e+00> : vector<4x128xf32>
      %35 = tpu.matmul %34, %33, %cst_24 {dimension_numbers = #tpu.dot_dimension_numbers<[1], [0], [0], [1], [0, 0, 1, 1], [], []>} : vector<4x2xf32>, vector<2x128xf32>, vector<4x128xf32> -> vector<4x128xf32>
      %c0_25 = arith.constant 0 : index
      %c0_26 = arith.constant 0 : index
      %36 = vector.load %arg8[%c0_25, %c0_26] : memref<4x1xf32, #tpu.memory_space<vmem>>, vector<4x1xf32>
      %37 = vector.broadcast %36 : vector<4x1xf32> to vector<4x128xf32>
      %38 = arith.addf %35, %37 : vector<4x128xf32>
      %c0_27 = arith.constant 0 : index
      %c0_28 = arith.constant 0 : index
      %c0_29 = arith.constant 0 : index
      %39 = vector.load %arg6[%c0_27, %c0_28, %c0_29] : memref<1x4x128xf32, #tpu.memory_space<vmem>>, vector<1x4x128xf32>
      %40 = vector.shape_cast %39 : vector<1x4x128xf32> to vector<4x128xf32>
      %41 = arith.addf %38, %40 : vector<4x128xf32>
      %c0_30 = arith.constant 0 : index
      %c0_31 = arith.constant 0 : index
      %c0_32 = arith.constant 0 : index
      %42 = vector.load %arg9[%c0_30, %c0_31, %c0_32] : memref<1x4x128xf32, #tpu.memory_space<vmem>>, vector<1x4x128xf32>
      %43 = vector.shape_cast %42 : vector<1x4x128xf32> to vector<4x128xf32>
      %44 = vector.shape_cast %41 : vector<4x128xf32> to vector<1x4x128xf32>
      tpu.vector_store %arg9[%c0_30, %c0_31, %c0_32], %44 {strides = array<i32>} : memref<1x4x128xf32, #tpu.memory_space<vmem>>, vector<1x4x128xf32>,
    } else {
    }
    return
  }
  func.func @transform_0(%arg0: i32, %arg1: i32, %arg2: i32) -> (i32, i32, i32) {
    %c0_i32 = arith.constant 0 : i32
    %c0_i32_0 = arith.constant 0 : i32
    return %arg0, %arg2, %c0_i32 : i32, i32, i32
  }
  func.func @transform_1(%arg0: i32, %arg1: i32, %arg2: i32) -> (i32, i32, i32) {
    %c0_i32 = arith.constant 0 : i32
    %c0_i32_0 = arith.constant 0 : i32
    return %arg0, %c0_i32, %arg1 : i32, i32, i32
  }
  func.func @transform_2(%arg0: i32, %arg1: i32, %arg2: i32) -> (i32, i32, i32) {
    %c0_i32 = arith.constant 0 : i32
    %c0_i32_0 = arith.constant 0 : i32
    return %arg0, %c0_i32, %arg2 : i32, i32, i32
  }
  func.func @transform_3(%arg0: i32, %arg1: i32, %arg2: i32) -> (i32, i32, i32) {
    %c0_i32 = arith.constant 0 : i32
    %c0_i32_0 = arith.constant 0 : i32
    return %arg0, %c0_i32, %arg1 : i32, i32, i32
  }
  func.func @transform_4(%arg0: i32, %arg1: i32, %arg2: i32) -> (i32, i32) {
    %c0_i32 = arith.constant 0 : i32
    %c0_i32_0 = arith.constant 0 : i32
    %c0_i32_1 = arith.constant 0 : i32
    return %c0_i32, %c0_i32_0 : i32, i32
  }
  func.func @transform_5(%arg0: i32, %arg1: i32, %arg2: i32) -> (i32, i32) {
    %c0_i32 = arith.constant 0 : i32
    %c0_i32_0 = arith.constant 0 : i32
    %c0_i32_1 = arith.constant 0 : i32
    return %c0_i32, %c0_i32_0 : i32, i32
  }
  func.func @transform_6(%arg0: i32, %arg1: i32, %arg2: i32) -> (i32, i32, i32) {
    %c0_i32 = arith.constant 0 : i32
    %c0_i32_0 = arith.constant 0 : i32
    return %arg0, %c0_i32, %arg1 : i32, i32, i32
  }
}

</mosaic_0001>

<llo_original>
// kernel: tpu_custom_call.1
$region0: #{tpu_custom_call.1}
  #allocation0 [shape = 'u32[]', space=smem, size = 0x4, offset = 0x4, fixed_abs, tag = 'smem constant byte address 0x4 - core index']
  #allocation1 [shape = 'u32[144,128]{1,0:T(1,128)}', space=vmem, size = 0x12000, scoped, tag = 'internal scratch']
  #allocation2 [shape = 'f32[1,128]{1,0:T(1,128)}', space=vmem, size = 0x200, scoped, tag = 'scratch operand']
  #allocation3 [shape = 'f32[3,128]{1,0:T(4,128)}', space=vmem, size = 0x800, scoped, tag = 'scratch operand']
  %s0 = inlined_call_operand.hbm [shape: f32[2,256,2], index: 0, kind: input, shape index: {}]
  %s1 = inlined_call_operand.hbm [shape: f32[2,2,256], index: 1, kind: input, shape index: {}]
  %s2 = inlined_call_operand.hbm [shape: f32[2,3,256], index: 2, kind: input, shape index: {}]
  %s3 = inlined_call_operand.hbm [shape: f32[2,4,256], index: 3, kind: input, shape index: {}]
  %s4 = inlined_call_operand.hbm [shape: f32[4,2], index: 4, kind: input, shape index: {}]
  %s5 = inlined_call_operand.hbm [shape: f32[4,1], index: 5, kind: input, shape index: {}]
  %s6 = inlined_call_operand.hbm [shape: f32[2,4,256], index: 6, kind: output, shape index: {}]
  %s7 = sld [smem:[#allocation0]]
  $region89: #{tpu_custom_call.1} parent=0
    _
  %s9 = ssub.s32 1, %s7
  %s10 = scalar_select 0, %s9, %s7
  $region1: #{tpu_custom_call.1} parent=0
    #allocation4 [shape = 'u8[131072]{0}', space=vmem, size = 0x20000, scoped, tag = 'input window, operand 0']
    #allocation5 [shape = 's32[2]{0}', space=sflag, size = 0x8, scoped, tag = 'scoped memory for tpu_custom_call.1']
    #allocation6 [shape = 's32[2]{0}', space=sflag, size = 0x8, scoped, tag = 'scoped memory for tpu_custom_call.1']
    #allocation7 [shape = 'u8[2048]{0}', space=vmem, size = 0x800, scoped, tag = 'input window, operand 1']
    #allocation8 [shape = 's32[2]{0}', space=sflag, size = 0x8, scoped, tag = 'scoped memory for tpu_custom_call.1']
    #allocation9 [shape = 'u8[4096]{0}', space=vmem, size = 0x1000, scoped, tag = 'input window, operand 2']
    #allocation10 [shape = 'u8[4096]{0}', space=vmem, size = 0x1000, scoped, tag = 'input window, operand 3']
    #allocation11 [shape = 's32[2]{0}', space=sflag, size = 0x8, scoped, tag = 'scoped memory for tpu_custom_call.1']
    #allocation12 [shape = 'u8[2048]{0}', space=vmem, size = 0x800, scoped, tag = 'input window, operand 4, single buffered']
    #allocation13 [shape = 'u8[2048]{0}', space=vmem, size = 0x800, scoped, tag = 'input window, operand 5, single buffered']
    #allocation14 [shape = 's32[1]{0}', space=sflag, size = 0x4, scoped, tag = 'scoped memory for tpu_custom_call.1']
    #allocation15 [shape = 'u8[4096]{0}', space=vmem, size = 0x1000, scoped, tag = 'output window, operand 0']
    %11 = vsyncpa [#allocation5], 0
    %s12 = scalar_lea.sflag [#allocation5], 1
    %13 = vsyncpa %s12, 0
    %14 = vsyncpa [#allocation8], 0
    %s15 = scalar_lea.sflag [#allocation8], 1
    %16 = vsyncpa %s15, 0
    %17 = vsyncpa [#allocation11], 0
    %s18 = scalar_lea.sflag [#allocation11], 1
    %19 = vsyncpa %s18, 0
    %20 = vsyncpa [#allocation14], 0
    %21 = vsyncpa [#allocation6], 0
    %s22 = scalar_lea.sflag [#allocation6], 1
    %23 = vsyncpa %s22, 0
    loop: start=0, step=1, limit=10
    $region2: #{tpu_custom_call.1} parent=1 // loop_pre_header
      _
    $region3: #{tpu_custom_call.1} parent=1 // loop_header
      %s25 = sphi 0, %s29
      %p26 = scmp.ge.s32.totalorder %s25, 10
      %s32 = sphi 0, %s51
      %s33 = sphi 0, %s47
      %s34 = sphi 0, %s43
      %s35 = sphi 0, %s32
      %s36 = sphi 0, %s33
      %s37 = sphi 0, %s34
      %s38 = sphi 0, %s35
      %s39 = sphi 0, %s36
      %s40 = sphi 0, %s37
      %s56 = sphi 0, %s58
      %s59 = sphi 0, %s56
      %s60 = sphi 0, %s59
      %s76 = sphi 0, %s60
      %s84 = sphi 0, %s86
      %s87 = sphi 0, %s84
      %s88 = sphi 0, %s87
      %s104 = sphi 0, %s88
      %s112 = sphi 0, %s114
      %s115 = sphi 0, %s112
      %s116 = sphi 0, %s115
      %s132 = sphi 0, %s116
      %s140 = sphi 0, %s142
      %s143 = sphi 0, %s140
      %s144 = sphi 0, %s143
      %s160 = sphi 0, %s144
      %s164 = sphi 0, %s164
      %s166 = sphi 0, %s164
      %s167 = sphi 0, %s166
      %s181 = sphi 0, %s167
      %s185 = sphi 0, %s185
      %s187 = sphi 0, %s185
      %s188 = sphi 0, %s187
      %s202 = sphi 0, %s188
      %s210 = sphi 0, %s212
      %s213 = sphi 0, %s210
      %s214 = sphi 0, %s213
      %s230 = sphi 0, %s214
    $region4: #{tpu_custom_call.1} parent=1 // loop_header_branch
      %28 = sbr.rel (%p26) target = $region8
    $region5: #{tpu_custom_call.1} parent=1 // loop_body
      %s30 = ssub.s32 %s25, 1
      %s31 = ssub.s32 %s25, 2
      %s41 = sadd.s32 1, %s34
      %p42 = scmp.ge.s32.totalorder %s41, 2
      %s43 = scalar_select %p42, 0, %s41
      %s44 = sadd.s32 1, %s33
      %s45 = scalar_select %p42, %s44, %s33
      %p46 = scmp.ge.s32.totalorder %s45, 2
      %s47 = scalar_select %p46, 0, %s45
      %s48 = sadd.s32 1, %s32
      %s49 = scalar_select %p46, %s48, %s32
      %p50 = scmp.ge.s32.totalorder %s49, 2
      %s51 = scalar_select %p50, 0, %s49
      %s52 = ssub.s32 %s32, %s51
      %s53 = ssub.s32 %s34, %s43
      %s54 = sor.u32 %s52, %s53
      %p55 = scmp.eq.s32.totalorder %s54, 0
      %s57 = sadd.s32 %s56, 1
      %s58 = scalar_select %p55, %s56, %s57
      %p61 = pneg %p55
      %p62 = scmp.eq.s32.totalorder %s25, 7
      %p63 = por %p61, %p62
      %p64 = scmp.ne.s32.totalorder %s56, %s59
      %p65 = scmp.eq.s32.totalorder %s25, 0
      %p66 = por %p64, %p65
      %p67 = scmp.ne.s32.totalorder %s56, %s59
      %p68 = scmp.eq.s32.totalorder %s30, 7
      %p69 = por %p67, %p68
      %p70 = scmp.ne.s32.totalorder %s59, %s60
      %p71 = scmp.eq.s32.totalorder %s30, 0
      %p72 = por %p70, %p71
      %p73 = scmp.ne.s32.totalorder %s59, %s60
      %p74 = scmp.eq.s32.totalorder %s31, 7
      %p75 = por %p73, %p74
      %p77 = scmp.ne.s32.totalorder %s60, %s76
      %p78 = scmp.eq.s32.totalorder %s31, 0
      %p79 = por %p77, %p78
      %s80 = ssub.s32 %s32, %s51
      %s81 = ssub.s32 %s33, %s47
      %s82 = sor.u32 %s80, %s81
      %p83 = scmp.eq.s32.totalorder %s82, 0
      %s85 = sadd.s32 %s84, 1
      %s86 = scalar_select %p83, %s84, %s85
      %p89 = pneg %p83
      %p90 = scmp.eq.s32.totalorder %s25, 7
      %p91 = por %p89, %p90
      %p92 = scmp.ne.s32.totalorder %s84, %s87
      %p93 = scmp.eq.s32.totalorder %s25, 0
      %p94 = por %p92, %p93
      %p95 = scmp.ne.s32.totalorder %s84, %s87
      %p96 = scmp.eq.s32.totalorder %s30, 7
      %p97 = por %p95, %p96
      %p98 = scmp.ne.s32.totalorder %s87, %s88
      %p99 = scmp.eq.s32.totalorder %s30, 0
      %p100 = por %p98, %p99
      %p101 = scmp.ne.s32.totalorder %s87, %s88
      %p102 = scmp.eq.s32.totalorder %s31, 7
      %p103 = por %p101, %p102
      %p105 = scmp.ne.s32.totalorder %s88, %s104
      %p106 = scmp.eq.s32.totalorder %s31, 0
      %p107 = por %p105, %p106
      %s108 = ssub.s32 %s32, %s51
      %s109 = ssub.s32 %s34, %s43
      %s110 = sor.u32 %s108, %s109
      %p111 = scmp.eq.s32.totalorder %s110, 0
      %s113 = sadd.s32 %s112, 1
      %s114 = scalar_select %p111, %s112, %s113
      %p117 = pneg %p111
      %p118 = scmp.eq.s32.totalorder %s25, 7
      %p119 = por %p117, %p118
      %p120 = scmp.ne.s32.totalorder %s112, %s115
      %p121 = scmp.eq.s32.totalorder %s25, 0
      %p122 = por %p120, %p121
      %p123 = scmp.ne.s32.totalorder %s112, %s115
      %p124 = scmp.eq.s32.totalorder %s30, 7
      %p125 = por %p123, %p124
      %p126 = scmp.ne.s32.totalorder %s115, %s116
      %p127 = scmp.eq.s32.totalorder %s30, 0
      %p128 = por %p126, %p127
      %p129 = scmp.ne.s32.totalorder %s115, %s116
      %p130 = scmp.eq.s32.totalorder %s31, 7
      %p131 = por %p129, %p130
      %p133 = scmp.ne.s32.totalorder %s116, %s132
      %p134 = scmp.eq.s32.totalorder %s31, 0
      %p135 = por %p133, %p134
      %s136 = ssub.s32 %s32, %s51
      %s137 = ssub.s32 %s33, %s47
      %s138 = sor.u32 %s136, %s137
      %p139 = scmp.eq.s32.totalorder %s138, 0
      %s141 = sadd.s32 %s140, 1
      %s142 = scalar_select %p139, %s140, %s141
      %p145 = pneg %p139
      %p146 = scmp.eq.s32.totalorder %s25, 7
      %p147 = por %p145, %p146
      %p148 = scmp.ne.s32.totalorder %s140, %s143
      %p149 = scmp.eq.s32.totalorder %s25, 0
      %p150 = por %p148, %p149
      %p151 = scmp.ne.s32.totalorder %s140, %s143
      %p152 = scmp.eq.s32.totalorder %s30, 7
      %p153 = por %p151, %p152
      %p154 = scmp.ne.s32.totalorder %s143, %s144
      %p155 = scmp.eq.s32.totalorder %s30, 0
      %p156 = por %p154, %p155
      %p157 = scmp.ne.s32.totalorder %s143, %s144
      %p158 = scmp.eq.s32.totalorder %s31, 7
      %p159 = por %p157, %p158
      %p161 = scmp.ne.s32.totalorder %s144, %s160
      %p162 = scmp.eq.s32.totalorder %s31, 0
      %p163 = por %p161, %p162
      %s165 = sadd.s32 %s164, 1
      %p168 = scmp.eq.s32.totalorder %s25, 7
      %p169 = scmp.ne.s32.totalorder %s164, %s166
      %p170 = scmp.eq.s32.totalorder %s25, 0
      %p171 = por %p169, %p170
      %p172 = scmp.ne.s32.totalorder %s164, %s166
      %p173 = scmp.eq.s32.totalorder %s30, 7
      %p174 = por %p172, %p173
      %p175 = scmp.ne.s32.totalorder %s166, %s167
      %p176 = scmp.eq.s32.totalorder %s30, 0
      %p177 = por %p175, %p176
      %p178 = scmp.ne.s32.totalorder %s166, %s167
      %p179 = scmp.eq.s32.totalorder %s31, 7
      %p180 = por %p178, %p179
      %p182 = scmp.ne.s32.totalorder %s167, %s181
      %p183 = scmp.eq.s32.totalorder %s31, 0
      %p184 = por %p182, %p183
      %s186 = sadd.s32 %s185, 1
      %p189 = scmp.eq.s32.totalorder %s25, 7
      %p190 = scmp.ne.s32.totalorder %s185, %s187
      %p191 = scmp.eq.s32.totalorder %s25, 0
      %p192 = por %p190, %p191
      %p193 = scmp.ne.s32.totalorder %s185, %s187
      %p194 = scmp.eq.s32.totalorder %s30, 7
      %p195 = por %p193, %p194
      %p196 = scmp.ne.s32.totalorder %s187, %s188
      %p197 = scmp.eq.s32.totalorder %s30, 0
      %p198 = por %p196, %p197
      %p199 = scmp.ne.s32.totalorder %s187, %s188
      %p200 = scmp.eq.s32.totalorder %s31, 7
      %p201 = por %p199, %p200
      %p203 = scmp.ne.s32.totalorder %s188, %s202
      %p204 = scmp.eq.s32.totalorder %s31, 0
      %p205 = por %p203, %p204
      %s206 = ssub.s32 %s32, %s51
      %s207 = ssub.s32 %s33, %s47
      %s208 = sor.u32 %s206, %s207
      %p209 = scmp.eq.s32.totalorder %s208, 0
      %s211 = sadd.s32 %s210, 1
      %s212 = scalar_select %p209, %s210, %s211
      %p215 = pneg %p209
      %p216 = scmp.eq.s32.totalorder %s25, 7
      %p217 = por %p215, %p216
      %p218 = scmp.ne.s32.totalorder %s210, %s213
      %p219 = scmp.eq.s32.totalorder %s25, 0
      %p220 = por %p218, %p219
      %p221 = scmp.ne.s32.totalorder %s210, %s213
      %p222 = scmp.eq.s32.totalorder %s30, 7
      %p223 = por %p221, %p222
      %p224 = scmp.ne.s32.totalorder %s213, %s214
      %p225 = scmp.eq.s32.totalorder %s30, 0
      %p226 = por %p224, %p225
      %p227 = scmp.ne.s32.totalorder %s213, %s214
      %p228 = scmp.eq.s32.totalorder %s31, 7
      %p229 = por %p227, %p228
      %p231 = scmp.ne.s32.totalorder %s214, %s230
      %p232 = scmp.eq.s32.totalorder %s31, 0
      %p233 = por %p231, %p232
      %p234 = scmp.le.s32.totalorder 1, %s25
      %p235 = scmp.lt.s32.totalorder %s25, 9
      %p236 = pnand %p234, %p235
      %p237 = pneg %p236
      // Predicated region
      $region9: #{tpu_custom_call.1} parent=5 // pred_check
        _
      $region10: #{tpu_custom_call.1} parent=5 // pred_check_branch
        %239 = sbr.rel (%p236) target = $region12
      $region11: #{tpu_custom_call.1} parent=5 // pred_region
        %s240 = ssub.s32 %s25, 1
        // Predicated region
        $region13: #{tpu_custom_call.1} parent=11 // pred_check
          %p241 = pneg %p177
        $region14: #{tpu_custom_call.1} parent=11 // pred_check_branch
          %243 = sbr.rel (%p241) target = $region16
        $region15: #{tpu_custom_call.1} parent=11 // pred_region
          %s245 = ssub.s32 64, 64
          %246 = vsyncadd [#allocation11], %s245
          %s248 = sshll.u32 [#allocation12], 4
          %s249 = int_to_ptr.vmem [resolvable:$true] %s248
          %251 = dma.hbm_to_vmem [thread:$0]  %s4, 64, %s249, [#allocation11]
        $region16: #{tpu_custom_call.1} parent=11 // pred_fallthru
          _
        // Predicated region
        $region17: #{tpu_custom_call.1} parent=11 // pred_check
          %p252 = pneg %p198
        $region18: #{tpu_custom_call.1} parent=11 // pred_check_branch
          %254 = sbr.rel (%p252) target = $region20
        $region19: #{tpu_custom_call.1} parent=11 // pred_region
          %s256 = ssub.s32 64, 64
          %257 = vsyncadd [#allocation14], %s256
          %s259 = sshll.u32 [#allocation13], 4
          %s260 = int_to_ptr.vmem [resolvable:$true] %s259
          %262 = dma.hbm_to_vmem [thread:$0]  %s5, 64, %s260, [#allocation14]
        $region20: #{tpu_custom_call.1} parent=11 // pred_fallthru
          _
      $region12: #{tpu_custom_call.1} parent=5 // pred_fallthru
        _
      %p263 = scmp.lt.s32.totalorder %s25, 8
      // Predicated region
      $region21: #{tpu_custom_call.1} parent=5 // pred_check
        %p264 = pneg %p263
      $region22: #{tpu_custom_call.1} parent=5 // pred_check_branch
        %266 = sbr.rel (%p264) target = $region24
      $region23: #{tpu_custom_call.1} parent=5 // pred_region
        // Predicated region
        $region25: #{tpu_custom_call.1} parent=23 // pred_check
          %p267 = pneg %p66
        $region26: #{tpu_custom_call.1} parent=23 // pred_check_branch
          %269 = sbr.rel (%p267) target = $region28
        $region27: #{tpu_custom_call.1} parent=23 // pred_region
          %s270 = sand.u32 %s56, 1
          %s271 = scalar_lea.sflag [#allocation5], %s270
          %s272 = sand.u32 %s56, 1
          %s273 = smul.addr %s272, 128
          %s274 = scalar_lea.vmem [#allocation4], %s273
          %s275 = smul.u32 16, %s34
          %s277 = ssub.s32 2048, 2048
          %278 = vsyncadd %s271, %s277
          %s279 = smul.addr %s32, 32
          %s280 = sadd.s32 %s275, %s279
          %s281 = smul.addr %s280, 128
          %s282 = scalar_lea.hbm %s0, %s281
          %s283 = sshll.u32 %s274, 4
          %s284 = int_to_ptr.vmem [resolvable:$true] %s283
          %289 = dma.hbm_to_vmem [thread:$0]  %s282, 2048, %s284, %s271, 128, 128, 8
        $region28: #{tpu_custom_call.1} parent=23 // pred_fallthru
          _
        // Predicated region
        $region29: #{tpu_custom_call.1} parent=23 // pred_check
          %p290 = pneg %p94
        $region30: #{tpu_custom_call.1} parent=23 // pred_check_branch
          %292 = sbr.rel (%p290) target = $region32
        $region31: #{tpu_custom_call.1} parent=23 // pred_region
          %s293 = sand.u32 %s25, 1
          %s294 = scalar_lea.sflag [#allocation8], %s293
          %s295 = sand.u32 %s84, 1
          %s296 = smul.addr %s295, 2
          %s297 = scalar_lea.vmem [#allocation7], %s296
          %s299 = ssub.s32 32, 32
          %300 = vsyncadd %s294, %s299
          %s301 = smul.addr %s32, 2
          %s302 = sadd.s32 %s33, %s301
          %s303 = smul.addr %s302, 32
          %s304 = scalar_lea.hbm %s1, %s303
          %s306 = sshll.u32 %s297, 4
          %s307 = int_to_ptr.vmem [resolvable:$true] %s306
          %309 = dma.hbm_to_vmem [thread:$0]  %s304, 32, %s307, %s294
        $region32: #{tpu_custom_call.1} parent=23 // pred_fallthru
          _
        // Predicated region
        $region33: #{tpu_custom_call.1} parent=23 // pred_check
          %p310 = pneg %p122
        $region34: #{tpu_custom_call.1} parent=23 // pred_check_branch
          %312 = sbr.rel (%p310) target = $region36
        $region35: #{tpu_custom_call.1} parent=23 // pred_region
          %s313 = sand.u32 %s25, 1
          %s314 = scalar_lea.sflag [#allocation8], %s313
          %s315 = sand.u32 %s112, 1
          %s316 = smul.addr %s315, 4
          %s317 = scalar_lea.vmem [#allocation9], %s316
          %s319 = ssub.s32 64, 64
          %320 = vsyncadd %s314, %s319
          %s321 = smul.addr %s32, 2
          %s322 = sadd.s32 %s34, %s321
          %s323 = smul.addr %s322, 64
          %s324 = scalar_lea.hbm %s2, %s323
          %s326 = sshll.u32 %s317, 4
          %s327 = int_to_ptr.vmem [resolvable:$true] %s326
          %329 = dma.hbm_to_vmem [thread:$0]  %s324, 64, %s327, %s314
        $region36: #{tpu_custom_call.1} parent=23 // pred_fallthru
          _
        // Predicated region
        $region37: #{tpu_custom_call.1} parent=23 // pred_check
          %p330 = pneg %p150
        $region38: #{tpu_custom_call.1} parent=23 // pred_check_branch
          %332 = sbr.rel (%p330) target = $region40
        $region39: #{tpu_custom_call.1} parent=23 // pred_region
          %s333 = sand.u32 %s25, 1
          %s334 = scalar_lea.sflag [#allocation11], %s333
          %s335 = sand.u32 %s140, 1
          %s336 = smul.addr %s335, 4
          %s337 = scalar_lea.vmem [#allocation10], %s336
          %s339 = ssub.s32 64, 64
          %340 = vsyncadd %s334, %s339
          %s341 = smul.addr %s32, 2
          %s342 = sadd.s32 %s33, %s341
          %s343 = smul.addr %s342, 64
          %s344 = scalar_lea.hbm %s3, %s343
          %s346 = sshll.u32 %s337, 4
          %s347 = int_to_ptr.vmem [resolvable:$true] %s346
          %349 = dma.hbm_to_vmem [thread:$0]  %s344, 64, %s347, %s334
        $region40: #{tpu_custom_call.1} parent=23 // pred_fallthru
          _
      $region24: #{tpu_custom_call.1} parent=5 // pred_fallthru
        _
      %p350 = scmp.le.s32.totalorder 1, %s25
      %p351 = scmp.lt.s32.totalorder %s25, 9
      %p352 = pnand %p350, %p351
      %p353 = pneg %p352
      // Predicated region
      $region41: #{tpu_custom_call.1} parent=5 // pred_check
        _
      $region42: #{tpu_custom_call.1} parent=5 // pred_check_branch
        %355 = sbr.rel (%p352) target = $region44
      $region43: #{tpu_custom_call.1} parent=5 // pred_region
        %s356 = ssub.s32 %s25, 1
        %s357 = sand.u32 %s59, 1
        %s358 = scalar_lea.sflag [#allocation5], %s357
        %s359 = sand.u32 %s59, 1
        %s360 = smul.addr %s359, 128
        %s361 = scalar_lea.vmem [#allocation4], %s360
        // Predicated region
        $region45: #{tpu_custom_call.1} parent=43 // pred_check
          %p362 = pneg %p72
        $region46: #{tpu_custom_call.1} parent=43 // pred_check_branch
          %364 = sbr.rel (%p362) target = $region48
        $region47: #{tpu_custom_call.1} parent=43 // pred_region
          %365 = dma.done %s358, 2048
        $region48: #{tpu_custom_call.1} parent=43 // pred_fallthru
          _
        %s366 = sand.u32 %s30, 1
        %s367 = scalar_lea.sflag [#allocation8], %s366
        %s368 = sand.u32 %s87, 1
        %s369 = smul.addr %s368, 2
        %s370 = scalar_lea.vmem [#allocation7], %s369
        // Predicated region
        $region49: #{tpu_custom_call.1} parent=43 // pred_check
          %p371 = pneg %p100
        $region50: #{tpu_custom_call.1} parent=43 // pred_check_branch
          %373 = sbr.rel (%p371) target = $region52
        $region51: #{tpu_custom_call.1} parent=43 // pred_region
          %374 = dma.done %s367, 32
        $region52: #{tpu_custom_call.1} parent=43 // pred_fallthru
          _
        %s375 = sand.u32 %s30, 1
        %s376 = scalar_lea.sflag [#allocation8], %s375
        %s377 = sand.u32 %s115, 1
        %s378 = smul.addr %s377, 4
        %s379 = scalar_lea.vmem [#allocation9], %s378
        // Predicated region
        $region53: #{tpu_custom_call.1} parent=43 // pred_check
          %p380 = pneg %p128
        $region54: #{tpu_custom_call.1} parent=43 // pred_check_branch
          %382 = sbr.rel (%p380) target = $region56
        $region55: #{tpu_custom_call.1} parent=43 // pred_region
          %383 = dma.done %s376, 64
        $region56: #{tpu_custom_call.1} parent=43 // pred_fallthru
          _
        %s384 = sand.u32 %s30, 1
        %s385 = scalar_lea.sflag [#allocation11], %s384
        %s386 = sand.u32 %s143, 1
        %s387 = smul.addr %s386, 4
        %s388 = scalar_lea.vmem [#allocation10], %s387
        // Predicated region
        $region57: #{tpu_custom_call.1} parent=43 // pred_check
          %p389 = pneg %p156
        $region58: #{tpu_custom_call.1} parent=43 // pred_check_branch
          %391 = sbr.rel (%p389) target = $region60
        $region59: #{tpu_custom_call.1} parent=43 // pred_region
          %392 = dma.done %s385, 64
        $region60: #{tpu_custom_call.1} parent=43 // pred_fallthru
          _
        // Predicated region
        $region61: #{tpu_custom_call.1} parent=43 // pred_check
          %p393 = pneg %p177
        $region62: #{tpu_custom_call.1} parent=43 // pred_check_branch
          %395 = sbr.rel (%p393) target = $region64
        $region63: #{tpu_custom_call.1} parent=43 // pred_region
          %396 = dma.done [#allocation11], 64
        $region64: #{tpu_custom_call.1} parent=43 // pred_fallthru
          _
        // Predicated region
        $region65: #{tpu_custom_call.1} parent=43 // pred_check
          %p397 = pneg %p198
        $region66: #{tpu_custom_call.1} parent=43 // pred_check_branch
          %399 = sbr.rel (%p397) target = $region68
        $region67: #{tpu_custom_call.1} parent=43 // pred_region
          %400 = dma.done [#allocation14], 64
        $region68: #{tpu_custom_call.1} parent=43 // pred_fallthru
          _
        %s401 = sand.u32 %s59, 1
        %s402 = scalar_lea.sflag [#allocation5], %s401
        %s403 = sand.u32 %s59, 1
        %s404 = smul.addr %s403, 128
        %s405 = scalar_lea.vmem [#allocation4], %s404
        %p406 = pneg %p72
        %p407 = pneg %p69
        %s408 = sand.u32 %s30, 1
        %s409 = scalar_lea.sflag [#allocation8], %s408
        %s410 = sand.u32 %s87, 1
        %s411 = smul.addr %s410, 2
        %s412 = scalar_lea.vmem [#allocation7], %s411
        %p413 = pneg %p100
        %p414 = pneg %p97
        %s415 = sand.u32 %s30, 1
        %s416 = scalar_lea.sflag [#allocation8], %s415
        %s417 = sand.u32 %s115, 1
        %s418 = smul.addr %s417, 4
        %s419 = scalar_lea.vmem [#allocation9], %s418
        %p420 = pneg %p128
        %p421 = pneg %p125
        %s422 = sand.u32 %s30, 1
        %s423 = scalar_lea.sflag [#allocation11], %s422
        %s424 = sand.u32 %s143, 1
        %s425 = smul.addr %s424, 4
        %s426 = scalar_lea.vmem [#allocation10], %s425
        %p427 = pneg %p156
        %p428 = pneg %p153
        %p429 = pneg %p177
        %p430 = pneg %p174
        %p431 = pneg %p198
        %p432 = pneg %p195
        %p433 = pneg %p226
        %p434 = pneg %p223
        %s435 = sand.u32 %s213, 1
        %s436 = scalar_lea.sflag [#allocation6], %s435
        %s437 = sand.u32 %s213, 1
        %s438 = smul.addr %s437, 4
        %s439 = scalar_lea.vmem [#allocation15], %s438
        %s440 = smul.u32 16, %s37
        %p441 = scmp.eq.s32.totalorder %s37, 0
        // Predicated region
        $region69: #{tpu_custom_call.1} parent=43 // pred_check
          %p442 = pneg %p441
        $region70: #{tpu_custom_call.1} parent=43 // pred_check_branch
          %444 = sbr.rel (%p442) target = $region72
        $region71: #{tpu_custom_call.1} parent=43 // pred_region
          %445 = vst [vmem:[#allocation2] sm:$0x1] -inf
          %446 = vst [vmem:[#allocation3] sm:$0x7] 0.0
        $region72: #{tpu_custom_call.1} parent=43 // pred_fallthru
          _
        %v447 = vld [vmem:[%s361] sm:$0xff]
        %v448 = vld [vmem:[%s361 + $0x8] sm:$0xff]
        %v449 = vld [vmem:[%s361 + $0x10] sm:$0xff]
        %v450 = vld [vmem:[%s361 + $0x18] sm:$0xff]
        %v451 = vld [vmem:[%s361 + $0x20] sm:$0xff]
        %v452 = vld [vmem:[%s361 + $0x28] sm:$0xff]
        %v453 = vld [vmem:[%s361 + $0x30] sm:$0xff]
        %v454 = vld [vmem:[%s361 + $0x38] sm:$0xff]
        %v455 = vld [vmem:[%s361 + $0x40] sm:$0xff]
        %v456 = vld [vmem:[%s361 + $0x48] sm:$0xff]
        %v457 = vld [vmem:[%s361 + $0x50] sm:$0xff]
        %v458 = vld [vmem:[%s361 + $0x58] sm:$0xff]
        %v459 = vld [vmem:[%s361 + $0x60] sm:$0xff]
        %v460 = vld [vmem:[%s361 + $0x68] sm:$0xff]
        %v461 = vld [vmem:[%s361 + $0x70] sm:$0xff]
        %v462 = vld [vmem:[%s361 + $0x78] sm:$0xff]
        %v463 = vld [vmem:[%s370] sm:$0x3]
        %vm464 = vcmask 15360
        %v466 = vsel %vm464, %v447, 0
        %v469 = vsel %vm464, %v448, 0
        %v472 = vsel %vm464, %v449, 0
        %v475 = vsel %vm464, %v450, 0
        %v478 = vsel %vm464, %v451, 0
        %v481 = vsel %vm464, %v452, 0
        %v484 = vsel %vm464, %v453, 0
        %v487 = vsel %vm464, %v454, 0
        %v490 = vsel %vm464, %v455, 0
        %v493 = vsel %vm464, %v456, 0
        %v496 = vsel %vm464, %v457, 0
        %v499 = vsel %vm464, %v458, 0
        %v502 = vsel %vm464, %v459, 0
        %v505 = vsel %vm464, %v460, 0
        %v508 = vsel %vm464, %v461, 0
        %v511 = vsel %vm464, %v462, 0
        %vm513 = vcmask 1041408
        %v515 = vsel %vm513, %v463, 0
        %517 = vmatprep.subr.mxu0 0.0
        %518 = vmatpush1.msra.mxu0 %v515
        %519 = vmatprep.subr.mxu0 0.0
        %520 = vmatpush1.msra.mxu0 0.0
        %521 = vmatprep.subr.mxu0 0.0
        %522 = vmatpush1.msra.mxu0 0.0
        %523 = vmatprep.subr.mxu0 0.0
        %524 = vmatpush1.msra.mxu0 0.0
        %525 = vmatprep.subr.mxu0 0.0
        %526 = vmatpush1.msra.mxu0 0.0
        %527 = vmatprep.subr.mxu0 0.0
        %528 = vmatpush1.msra.mxu0 0.0
        %529 = vmatprep.subr.mxu0 0.0
        %530 = vmatpush1.msra.mxu0 0.0
        %531 = vmatprep.subr.mxu0 0.0
        %532 = vmatpush1.msra.mxu0 0.0
        %533 = vmatprep.subr.mxu0 0.0
        %534 = vmatpush1.msra.mxu0 0.0
        %535 = vmatprep.subr.mxu0 0.0
        %536 = vmatpush1.msra.mxu0 0.0
        %537 = vmatprep.subr.mxu0 0.0
        %538 = vmatpush1.msra.mxu0 0.0
        %539 = vmatprep.subr.mxu0 0.0
        %540 = vmatpush1.msra.mxu0 0.0
        %541 = vmatprep.subr.mxu0 0.0
        %542 = vmatpush1.msra.mxu0 0.0
        %543 = vmatprep.subr.mxu0 0.0
        %544 = vmatpush1.msra.mxu0 0.0
        %545 = vmatprep.subr.mxu0 0.0
        %546 = vmatpush1.msra.mxu0 0.0
        %547 = vmatprep.subr.mxu0 0.0
        %548 = vmatpush1.msra.mxu0 0.0
        %549 = vmatprep.subr.mxu0 0.0
        %550 = vmatpush1.msra.mxu0 0.0
        %551 = vmatprep.subr.mxu0 0.0
        %552 = vmatpush1.msra.mxu0 0.0
        %553 = vmatprep.subr.mxu0 0.0
        %554 = vmatpush1.msra.mxu0 0.0
        %555 = vmatprep.subr.mxu0 0.0
        %556 = vmatpush1.msra.mxu0 0.0
        %557 = vmatprep.subr.mxu0 0.0
        %558 = vmatpush1.msra.mxu0 0.0
        %559 = vmatprep.subr.mxu0 0.0
        %560 = vmatpush1.msra.mxu0 0.0
        %561 = vmatprep.subr.mxu0 0.0
        %562 = vmatpush1.msra.mxu0 0.0
        %563 = vmatprep.subr.mxu0 0.0
        %564 = vmatpush1.msra.mxu0 0.0
        %565 = vmatprep.subr.mxu0 0.0
        %566 = vmatpush1.msra.mxu0 0.0
        %567 = vmatprep.subr.mxu0 0.0
        %568 = vmatpush1.msra.mxu0 0.0
        %569 = vmatprep.subr.mxu0 0.0
        %570 = vmatpush1.msra.mxu0 0.0
        %571 = vmatprep.subr.mxu0 0.0
        %572 = vmatpush1.msra.mxu0 0.0
        %573 = vmatprep.subr.mxu0 0.0
        %574 = vmatpush1.msra.mxu0 0.0
        %575 = vmatprep.subr.mxu0 0.0
        %576 = vmatpush1.msra.mxu0 0.0
        %577 = vmatprep.subr.mxu0 0.0
        %578 = vmatpush1.msra.mxu0 0.0
        %579 = vmatprep.subr.mxu0 0.0
        %580 = vmatpush1.msra.mxu0 0.0
        %581 = vmatprep.mubr.f32.mxu0 0.0
        %582 = vmatmul.mubr.f32.gmra.mrb[0].mxu0 %v466
        %v583 = vpop.f32.mrb[0].mxu0
        %v584 = vadd.f32 0.0, %v583
        %v585 = vpop.f32.mrb[0].mxu0
        %586 = vmatprep.mubr.f32.mxu0 0.0
        %587 = vmatmul.mubr.f32.gmra.mrb[0].mxu0 %v469
        %v588 = vpop.f32.mrb[0].mxu0
        %v589 = vadd.f32 0.0, %v588
        %v590 = vpop.f32.mrb[0].mxu0
        %591 = vmatprep.mubr.f32.mxu0 0.0
        %592 = vmatmul.mubr.f32.gmra.mrb[0].mxu0 %v472
        %v593 = vpop.f32.mrb[0].mxu0
        %v594 = vadd.f32 0.0, %v593
        %v595 = vpop.f32.mrb[0].mxu0
        %596 = vmatprep.mubr.f32.mxu0 0.0
        %597 = vmatmul.mubr.f32.gmra.mrb[0].mxu0 %v475
        %v598 = vpop.f32.mrb[0].mxu0
        %v599 = vadd.f32 0.0, %v598
        %v600 = vpop.f32.mrb[0].mxu0
        %601 = vmatprep.mubr.f32.mxu0 0.0
        %602 = vmatmul.mubr.f32.gmra.mrb[0].mxu0 %v478
        %v603 = vpop.f32.mrb[0].mxu0
        %v604 = vadd.f32 0.0, %v603
        %v605 = vpop.f32.mrb[0].mxu0
        %606 = vmatprep.mubr.f32.mxu0 0.0
        %607 = vmatmul.mubr.f32.gmra.mrb[0].mxu0 %v481
        %v608 = vpop.f32.mrb[0].mxu0
        %v609 = vadd.f32 0.0, %v608
        %v610 = vpop.f32.mrb[0].mxu0
        %611 = vmatprep.mubr.f32.mxu0 0.0
        %612 = vmatmul.mubr.f32.gmra.mrb[0].mxu0 %v484
        %v613 = vpop.f32.mrb[0].mxu0
        %v614 = vadd.f32 0.0, %v613
        %v615 = vpop.f32.mrb[0].mxu0
        %616 = vmatprep.mubr.f32.mxu0 0.0
        %617 = vmatmul.mubr.f32.gmra.mrb[0].mxu0 %v487
        %v618 = vpop.f32.mrb[0].mxu0
        %v619 = vadd.f32 0.0, %v618
        %v620 = vpop.f32.mrb[0].mxu0
        %621 = vmatprep.mubr.f32.mxu0 0.0
        %622 = vmatmul.mubr.f32.gmra.mrb[0].mxu0 %v490
        %v623 = vpop.f32.mrb[0].mxu0
        %v624 = vadd.f32 0.0, %v623
        %v625 = vpop.f32.mrb[0].mxu0
        %626 = vmatprep.mubr.f32.mxu0 0.0
        %627 = vmatmul.mubr.f32.gmra.mrb[0].mxu0 %v493
        %v628 = vpop.f32.mrb[0].mxu0
        %v629 = vadd.f32 0.0, %v628
        %v630 = vpop.f32.mrb[0].mxu0
        %631 = vmatprep.mubr.f32.mxu0 0.0
        %632 = vmatmul.mubr.f32.gmra.mrb[0].mxu0 %v496
        %v633 = vpop.f32.mrb[0].mxu0
        %v634 = vadd.f32 0.0, %v633
        %v635 = vpop.f32.mrb[0].mxu0
        %636 = vmatprep.mubr.f32.mxu0 0.0
        %637 = vmatmul.mubr.f32.gmra.mrb[0].mxu0 %v499
        %v638 = vpop.f32.mrb[0].mxu0
        %v639 = vadd.f32 0.0, %v638
        %v640 = vpop.f32.mrb[0].mxu0
        %641 = vmatprep.mubr.f32.mxu0 0.0
        %642 = vmatmul.mubr.f32.gmra.mrb[0].mxu0 %v502
        %v643 = vpop.f32.mrb[0].mxu0
        %v644 = vadd.f32 0.0, %v643
        %v645 = vpop.f32.mrb[0].mxu0
        %646 = vmatprep.mubr.f32.mxu0 0.0
        %647 = vmatmul.mubr.f32.gmra.mrb[0].mxu0 %v505
        %v648 = vpop.f32.mrb[0].mxu0
        %v649 = vadd.f32 0.0, %v648
        %v650 = vpop.f32.mrb[0].mxu0
        %651 = vmatprep.mubr.f32.mxu0 0.0
        %652 = vmatmul.mubr.f32.gmra.mrb[0].mxu0 %v508
        %v653 = vpop.f32.mrb[0].mxu0
        %v654 = vadd.f32 0.0, %v653
        %v655 = vpop.f32.mrb[0].mxu0
        %656 = vmatprep.mubr.f32.mxu0 0.0
        %657 = vmatmul.mubr.f32.gmra.mrb[0].mxu0 %v511
        %v658 = vpop.f32.mrb[0].mxu0
        %v659 = vadd.f32 0.0, %v658
        %v660 = vpop.f32.mrb[0].mxu0
        %661 = vdwg.mxu0
        %v662 = vld [vmem:[#allocation2] sm:$0x1]
        %v663 = vmax.f32 %v584, %v604
        %v664 = vmax.f32 %v589, %v609
        %v665 = vmax.f32 %v594, %v614
        %v666 = vmax.f32 %v599, %v619
        %v667 = vmax.f32 %v663, %v624
        %v668 = vmax.f32 %v664, %v629
        %v669 = vmax.f32 %v665, %v634
        %v670 = vmax.f32 %v666, %v639
        %v671 = vmax.f32 %v667, %v644
        %v672 = vmax.f32 %v668, %v649
        %v673 = vmax.f32 %v669, %v654
        %v674 = vmax.f32 %v670, %v659
        %v675 = vmax.f32 %v671, %v672
        %v676 = vmax.f32 %v673, %v674
        %v677 = vmax.f32 %v675, %v676
        %v678 = vrot.slane %v677, 4
        %v679 = vmax.f32 %v677, %v678
        %v680 = vrot.slane %v679, 2
        %v681 = vmax.f32 %v679, %v680
        %v682 = vrot.slane %v681, 1
        %v683 = vmax.f32 %v681, %v682
        %v684 = vmax.f32 %v662, %v683
        %v685 = vsub.f32 %v662, %v684
        %v686 = vmul.f32 %v685, 1.442695
        %v687 = vpow.pop %v686
        %v689 = vlaneseq
        %v690 = vshrl.u32 %v689, 7
        %v691 = vsub.s32 0, %v690
        %v692 = vrot.slane %v684, %v691
        %v694 = vsub.f32 %v584, %v692
        %v695 = vsub.f32 %v589, %v692
        %v696 = vsub.f32 %v594, %v692
        %v697 = vsub.f32 %v599, %v692
        %v698 = vsub.f32 %v604, %v692
        %v699 = vsub.f32 %v609, %v692
        %v700 = vsub.f32 %v614, %v692
        %v701 = vsub.f32 %v619, %v692
        %v702 = vsub.f32 %v624, %v692
        %v703 = vsub.f32 %v629, %v692
        %v704 = vsub.f32 %v634, %v692
        %v705 = vsub.f32 %v639, %v692
        %v706 = vsub.f32 %v644, %v692
        %v707 = vsub.f32 %v649, %v692
        %v708 = vsub.f32 %v654, %v692
        %v709 = vsub.f32 %v659, %v692
        %v710 = vmul.f32 %v694, 1.442695
        %v711 = vpow.pop %v710
        %v712 = vmul.f32 %v695, 1.442695
        %v713 = vpow.pop %v712
        %v714 = vmul.f32 %v696, 1.442695
        %v715 = vpow.pop %v714
        %v716 = vmul.f32 %v697, 1.442695
        %v717 = vpow.pop %v716
        %v718 = vmul.f32 %v698, 1.442695
        %v719 = vpow.pop %v718
        %v720 = vmul.f32 %v699, 1.442695
        %v721 = vpow.pop %v720
        %v722 = vmul.f32 %v700, 1.442695
        %v723 = vpow.pop %v722
        %v724 = vmul.f32 %v701, 1.442695
        %v725 = vpow.pop %v724
        %v726 = vmul.f32 %v702, 1.442695
        %v727 = vpow.pop %v726
        %v728 = vmul.f32 %v703, 1.442695
        %v729 = vpow.pop %v728
        %v730 = vmul.f32 %v704, 1.442695
        %v731 = vpow.pop %v730
        %v732 = vmul.f32 %v705, 1.442695
        %v733 = vpow.pop %v732
        %v734 = vmul.f32 %v706, 1.442695
        %v735 = vpow.pop %v734
        %v736 = vmul.f32 %v707, 1.442695
        %v737 = vpow.pop %v736
        %v738 = vmul.f32 %v708, 1.442695
        %v739 = vpow.pop %v738
        %v740 = vmul.f32 %v709, 1.442695
        %v741 = vpow.pop %v740
        %v742 = vld [vmem:[%s379] sm:$0x7]
        %743 = vmatprep.subr.mxu0 0.0
        %744 = vmatpush1.msra.mxu0 %v711
        %745 = vmatprep.subr.mxu0 0.0
        %746 = vmatpush1.msra.mxu0 %v713
        %747 = vmatprep.subr.mxu0 0.0
        %748 = vmatpush1.msra.mxu0 %v715
        %749 = vmatprep.subr.mxu0 0.0
        %750 = vmatpush1.msra.mxu0 %v717
        %751 = vmatprep.subr.mxu0 0.0
        %752 = vmatpush1.msra.mxu0 %v719
        %753 = vmatprep.subr.mxu0 0.0
        %754 = vmatpush1.msra.mxu0 %v721
        %755 = vmatprep.subr.mxu0 0.0
        %756 = vmatpush1.msra.mxu0 %v723
        %757 = vmatprep.subr.mxu0 0.0
        %758 = vmatpush1.msra.mxu0 %v725
        %759 = vmatprep.subr.mxu0 0.0
        %760 = vmatpush1.msra.mxu0 %v727
        %761 = vmatprep.subr.mxu0 0.0
        %762 = vmatpush1.msra.mxu0 %v729
        %763 = vmatprep.subr.mxu0 0.0
        %764 = vmatpush1.msra.mxu0 %v731
        %765 = vmatprep.subr.mxu0 0.0
        %766 = vmatpush1.msra.mxu0 %v733
        %767 = vmatprep.subr.mxu0 0.0
        %768 = vmatpush1.msra.mxu0 %v735
        %769 = vmatprep.subr.mxu0 0.0
        %770 = vmatpush1.msra.mxu0 %v737
        %771 = vmatprep.subr.mxu0 0.0
        %772 = vmatpush1.msra.mxu0 %v739
        %773 = vmatprep.subr.mxu0 0.0
        %774 = vmatpush1.msra.mxu0 %v741
        %775 = vmatprep.subr.mxu0 0.0
        %776 = vmatpush1.msra.mxu0 0.0
        %777 = vmatprep.subr.mxu0 0.0
        %778 = vmatpush1.msra.mxu0 0.0
        %779 = vmatprep.subr.mxu0 0.0
        %780 = vmatpush1.msra.mxu0 0.0
        %781 = vmatprep.subr.mxu0 0.0
        %782 = vmatpush1.msra.mxu0 0.0
        %783 = vmatprep.subr.mxu0 0.0
        %784 = vmatpush1.msra.mxu0 0.0
        %785 = vmatprep.subr.mxu0 0.0
        %786 = vmatpush1.msra.mxu0 0.0
        %787 = vmatprep.subr.mxu0 0.0
        %788 = vmatpush1.msra.mxu0 0.0
        %789 = vmatprep.subr.mxu0 0.0
        %790 = vmatpush1.msra.mxu0 0.0
        %791 = vmatprep.subr.mxu0 0.0
        %792 = vmatpush1.msra.mxu0 0.0
        %793 = vmatprep.subr.mxu0 0.0
        %794 = vmatpush1.msra.mxu0 0.0
        %795 = vmatprep.subr.mxu0 0.0
        %796 = vmatpush1.msra.mxu0 0.0
        %797 = vmatprep.subr.mxu0 0.0
        %798 = vmatpush1.msra.mxu0 0.0
        %799 = vmatprep.subr.mxu0 0.0
        %800 = vmatpush1.msra.mxu0 0.0
        %801 = vmatprep.subr.mxu0 0.0
        %802 = vmatpush1.msra.mxu0 0.0
        %803 = vmatprep.subr.mxu0 0.0
        %804 = vmatpush1.msra.mxu0 0.0
        %805 = vmatprep.subr.mxu0 0.0
        %806 = vmatpush1.msra.mxu0 0.0
        %807 = vmatprep.mubr.f32.mxu0 0.0
        %808 = vmatmul.mubr.f32.gmra.mrb[0].mxu0 %v742
        %v809 = vpop.f32.mrb[0].mxu0
        %v810 = vadd.f32 0.0, %v809
        %v811 = vpop.f32.mrb[0].mxu0
        %812 = vdwg.mxu0
        %v813 = vld [vmem:[#allocation3] sm:$0x7]
        %v815 = vlaneseq
        %v816 = vshrl.u32 %v815, 7
        %v817 = vsub.s32 0, %v816
        %v818 = vrot.slane %v687, %v817
        %v820 = vmul.f32 %v818, %v813
        %v821 = vadd.f32 %v820, %v810
        %822 = vst [vmem:[#allocation3] sm:$0x7] %v821
        %823 = vst [vmem:[#allocation2] sm:$0x1] %v684
        %p824 = scmp.eq.s32.totalorder %s37, 1
        // Predicated region
        $region73: #{tpu_custom_call.1} parent=43 // pred_check
          %p825 = pneg %p824
        $region74: #{tpu_custom_call.1} parent=43 // pred_check_branch
          %827 = sbr.rel (%p825) target = $region76
        $region75: #{tpu_custom_call.1} parent=43 // pred_region
          %v828 = vld [vmem:[#allocation3] sm:$0x7]
          %v829 = vlaneseq
          %v830 = vshrl.u32 %v829, 7
          %v831 = vsub.s32 2, %v830
          %v832 = vrot.slane %v828, %v831
          %v833 = vrcp.pop %v832
          %v834 = vmul.f32 %v828, %v833
          %v835 = vld [vmem:[#allocation12] sm:$0xf]
          %v836 = vld [vmem:[#allocation13] sm:$0xf]
          %838 = vset.pattern.permute.xlu0 0
          %839 = vperm.xlu0 %838, %v836
          %v840 = vpop.permute.xlu0 %839
          %v843 = vsel %vm464, %v835, 0
          %v846 = vsel %vm513, %v834, 0
          %848 = vmatprep.subr.mxu0 0.0
          %849 = vmatpush1.msra.mxu0 %v846
          %850 = vmatprep.subr.mxu0 0.0
          %851 = vmatpush1.msra.mxu0 0.0
          %852 = vmatprep.subr.mxu0 0.0
          %853 = vmatpush1.msra.mxu0 0.0
          %854 = vmatprep.subr.mxu0 0.0
          %855 = vmatpush1.msra.mxu0 0.0
          %856 = vmatprep.subr.mxu0 0.0
          %857 = vmatpush1.msra.mxu0 0.0
          %858 = vmatprep.subr.mxu0 0.0
          %859 = vmatpush1.msra.mxu0 0.0
          %860 = vmatprep.subr.mxu0 0.0
          %861 = vmatpush1.msra.mxu0 0.0
          %862 = vmatprep.subr.mxu0 0.0
          %863 = vmatpush1.msra.mxu0 0.0
          %864 = vmatprep.subr.mxu0 0.0
          %865 = vmatpush1.msra.mxu0 0.0
          %866 = vmatprep.subr.mxu0 0.0
          %867 = vmatpush1.msra.mxu0 0.0
          %868 = vmatprep.subr.mxu0 0.0
          %869 = vmatpush1.msra.mxu0 0.0
          %870 = vmatprep.subr.mxu0 0.0
          %871 = vmatpush1.msra.mxu0 0.0
          %872 = vmatprep.subr.mxu0 0.0
          %873 = vmatpush1.msra.mxu0 0.0
          %874 = vmatprep.subr.mxu0 0.0
          %875 = vmatpush1.msra.mxu0 0.0
          %876 = vmatprep.subr.mxu0 0.0
          %877 = vmatpush1.msra.mxu0 0.0
          %878 = vmatprep.subr.mxu0 0.0
          %879 = vmatpush1.msra.mxu0 0.0
          %880 = vmatprep.subr.mxu0 0.0
          %881 = vmatpush1.msra.mxu0 0.0
          %882 = vmatprep.subr.mxu0 0.0
          %883 = vmatpush1.msra.mxu0 0.0
          %884 = vmatprep.subr.mxu0 0.0
          %885 = vmatpush1.msra.mxu0 0.0
          %886 = vmatprep.subr.mxu0 0.0
          %887 = vmatpush1.msra.mxu0 0.0
          %888 = vmatprep.subr.mxu0 0.0
          %889 = vmatpush1.msra.mxu0 0.0
          %890 = vmatprep.subr.mxu0 0.0
          %891 = vmatpush1.msra.mxu0 0.0
          %892 = vmatprep.subr.mxu0 0.0
          %893 = vmatpush1.msra.mxu0 0.0
          %894 = vmatprep.subr.mxu0 0.0
          %895 = vmatpush1.msra.mxu0 0.0
          %896 = vmatprep.subr.mxu0 0.0
          %897 = vmatpush1.msra.mxu0 0.0
          %898 = vmatprep.subr.mxu0 0.0
          %899 = vmatpush1.msra.mxu0 0.0
          %900 = vmatprep.subr.mxu0 0.0
          %901 = vmatpush1.msra.mxu0 0.0
          %902 = vmatprep.subr.mxu0 0.0
          %903 = vmatpush1.msra.mxu0 0.0
          %904 = vmatprep.subr.mxu0 0.0
          %905 = vmatpush1.msra.mxu0 0.0
          %906 = vmatprep.subr.mxu0 0.0
          %907 = vmatpush1.msra.mxu0 0.0
          %908 = vmatprep.subr.mxu0 0.0
          %909 = vmatpush1.msra.mxu0 0.0
          %910 = vmatprep.subr.mxu0 0.0
          %911 = vmatpush1.msra.mxu0 0.0
          %912 = vmatprep.mubr.f32.mxu0 0.0
          %913 = vmatmul.mubr.f32.gmra.mrb[0].mxu0 %v843
          %v914 = vpop.f32.mrb[0].mxu0
          %v915 = vadd.f32 %v840, %v914
          %v916 = vpop.f32.mrb[0].mxu0
          %917 = vdwg.mxu0
          %v918 = vld [vmem:[%s388] sm:$0xf]
          %v919 = vadd.f32 %v915, %v918
          %920 = vst [vmem:[%s439] sm:$0xf] %v919
        $region76: #{tpu_custom_call.1} parent=43 // pred_fallthru
          _
        %s921 = sand.u32 %s213, 1
        %s922 = scalar_lea.sflag [#allocation6], %s921
        %s923 = sand.u32 %s213, 1
        %s924 = smul.addr %s923, 4
        %s925 = scalar_lea.vmem [#allocation15], %s924
        // Predicated region
        $region77: #{tpu_custom_call.1} parent=43 // pred_check
          %p926 = pneg %p223
        $region78: #{tpu_custom_call.1} parent=43 // pred_check_branch
          %928 = sbr.rel (%p926) target = $region80
        $region79: #{tpu_custom_call.1} parent=43 // pred_region
          %s930 = ssub.s32 64, 64
          %931 = vsyncadd %s922, %s930
          %s932 = smul.addr %s35, 2
          %s933 = sadd.s32 %s36, %s932
          %s934 = smul.addr %s933, 64
          %s935 = scalar_lea.hbm %s6, %s934
          %s937 = sshll.u32 %s925, 4
          %s938 = int_to_ptr.vmem [resolvable:$true] %s937
          %940 = dma.vmem_to_hbm [thread:$0]  %s938, 64, %s935, %s922
        $region80: #{tpu_custom_call.1} parent=43 // pred_fallthru
          _
      $region44: #{tpu_custom_call.1} parent=5 // pred_fallthru
        _
      %p941 = scmp.le.s32.totalorder 2, %s25
      // Predicated region
      $region81: #{tpu_custom_call.1} parent=5 // pred_check
        %p942 = pneg %p941
      $region82: #{tpu_custom_call.1} parent=5 // pred_check_branch
        %944 = sbr.rel (%p942) target = $region84
      $region83: #{tpu_custom_call.1} parent=5 // pred_region
        %s945 = ssub.s32 %s25, 2
        // Predicated region
        $region85: #{tpu_custom_call.1} parent=83 // pred_check
          %p946 = pneg %p229
        $region86: #{tpu_custom_call.1} parent=83 // pred_check_branch
          %948 = sbr.rel (%p946) target = $region88
        $region87: #{tpu_custom_call.1} parent=83 // pred_region
          %s949 = sand.u32 %s214, 1
          %s950 = scalar_lea.sflag [#allocation6], %s949
          %s951 = sand.u32 %s214, 1
          %s952 = smul.addr %s951, 4
          %s953 = scalar_lea.vmem [#allocation15], %s952
          %954 = dma.done %s950, 64
        $region88: #{tpu_custom_call.1} parent=83 // pred_fallthru
          _
      $region84: #{tpu_custom_call.1} parent=5 // pred_fallthru
        _
    $region6: #{tpu_custom_call.1} parent=1 // loop_footer
      %s29 = sadd.s32 1, %s25
    $region7: #{tpu_custom_call.1} parent=1 // loop_footer_branch
      %24 = sbr.rel target = $region3
    $region8: #{tpu_custom_call.1} parent=1 // loop_exit
      _
    %955 = vsyncpa [#allocation5], 1
    %s956 = scalar_lea.sflag [#allocation5], 1
    %957 = vsyncpa %s956, 1
    %958 = vsyncpa [#allocation8], 1
    %s959 = scalar_lea.sflag [#allocation8], 1
    %960 = vsyncpa %s959, 1
    %961 = vsyncpa [#allocation11], 1
    %s962 = scalar_lea.sflag [#allocation11], 1
    %963 = vsyncpa %s962, 1
    %964 = vsyncpa [#allocation14], 1
    %965 = vsyncpa [#allocation6], 1
    %s966 = scalar_lea.sflag [#allocation6], 1
    %967 = vsyncpa %s966, 1

</llo_original>
